<compile_context>
chip_gen: v6e
topology: v6e:2x2x1
jax: 0.10.0
libtpu: 0.0.40
codegen_flags: <defaults>
</compile_context>

<pallas_src>
import math
import jax
import jax.numpy as jnp
from jax.experimental import pallas as pl
from jax.experimental.pallas import tpu as pltpu

BN_EPS = 1e-5


# ----------------------------- fused Pallas kernel -----------------------------

def _graph_conv(y, att, w_blk, bias):
    """y: (N, B*Fin), att: (N, N), w_blk: (B*Fin, B*Fout) block-diag, bias: (1, B*Fout)."""
    if w_blk.shape[0] <= w_blk.shape[1]:
        # (att @ y) @ W : do the expensive N x N contraction on the narrower width.
        t = jnp.dot(att, y, preferred_element_type=jnp.float32)
        out = jnp.dot(t, w_blk, preferred_element_type=jnp.float32)
    else:
        # att @ (y @ W)
        s = jnp.dot(y, w_blk, preferred_element_type=jnp.float32)
        out = jnp.dot(att, s, preferred_element_type=jnp.float32)
    return out + bias


def _bn_tanh(y, scale, shift):
    # Eval-mode BatchNorm folded to scale/shift, followed by tanh.
    return jnp.tanh(y * scale + shift)


def _build_fused_kernel(num_stage):
    """Returns a kernel taking (x, *params..., out_ref); whole net in one call."""

    def kernel(*refs):
        o_ref = refs[-1]
        it = iter(refs[:-1])
        nxt = lambda: next(it)[...]

        x = nxt()                                      # (N, B*Fin)

        # gc1 -> bn -> tanh
        w1, att1, b1 = nxt(), nxt(), nxt()
        sc, sh = nxt(), nxt()
        y = _bn_tanh(_graph_conv(x, att1, w1, b1), sc, sh)

        # residual GC blocks
        for _ in range(num_stage):
            wa, atta, ba, sca, sha = nxt(), nxt(), nxt(), nxt(), nxt()
            wb, attb, bb, scb, shb = nxt(), nxt(), nxt(), nxt(), nxt()
            res = y
            y = _bn_tanh(_graph_conv(y, atta, wa, ba), sca, sha)
            y = _bn_tanh(_graph_conv(y, attb, wb, bb), scb, shb) + res

        # gc7 + input residual
        w7, att7, b7 = nxt(), nxt(), nxt()
        out = _graph_conv(y, att7, w7, b7) + x
        o_ref[...] = out.astype(o_ref.dtype)

    return kernel


# ----------------------------- wrapper -----------------------------

def gcn_forward(params, x):
    """Fused GCN forward. x: (B, N, Fin) float32 -> (B, N, Fin) float32."""
    B, N, Fin = x.shape
    Fh = params["gc1"]["weight"].shape[1]
    num_stage = len(params["gcbs"])

    eye_b = jnp.eye(B, dtype=jnp.float32)

    def prep_gc(p):
        # Block-diagonal weight so one (N, B*Fin) @ (B*Fin, B*Fout) matmul
        # applies W to every batch at once.
        w_blk = jnp.kron(eye_b, p["weight"])                  # (B*Fin, B*Fout)
        bias2 = jnp.tile(p["bias"].reshape(1, -1), (1, B))    # (1, B*Fout)
        return [w_blk, p["att"], bias2]

    def prep_bn(p):
        # Fold eval-mode BN into scale/shift once, outside the kernel.
        scale = p["gamma"] * jax.lax.rsqrt(p["var"] + BN_EPS)  # (N, F)
        shift = p["beta"] - p["mean"] * scale
        return [jnp.tile(scale, (1, B)), jnp.tile(shift, (1, B))]

    # Activations live as (N, B*F): batch folded into the lane axis.
    x2 = jnp.transpose(x, (1, 0, 2)).reshape(N, B * Fin)

    args = [x2]
    args += prep_gc(params["gc1"]) + prep_bn(params["bn"])
    for blk in params["gcbs"]:
        args += prep_gc(blk["gc1"]) + prep_bn(blk["bn1"])
        args += prep_gc(blk["gc2"]) + prep_bn(blk["bn2"])
    args += prep_gc(params["gc7"])

    def gc_flops(fi, fo):
        return 2 * B * N * (N * min(fi, fo) + fi * fo)

    flops = gc_flops(Fin, Fh) + 2 * num_stage * gc_flops(Fh, Fh) + gc_flops(Fh, Fin)
    transcendentals = (1 + 2 * num_stage) * B * N * Fh
    bytes_accessed = 4 * (sum(int(a.size) for a in args) + B * N * Fin)

    out2 = pl.pallas_call(
        _build_fused_kernel(num_stage),
        out_shape=jax.ShapeDtypeStruct((N, B * Fin), jnp.float32),
        in_specs=[pl.BlockSpec(memory_space=pltpu.MemorySpace.VMEM)] * len(args),
        out_specs=pl.BlockSpec(memory_space=pltpu.MemorySpace.VMEM),
        cost_estimate=pl.CostEstimate(
            flops=flops,
            transcendentals=transcendentals,
            bytes_accessed=bytes_accessed,
        ),
    )(*args)

    # Back to (B, N, Fin).
    return out2.reshape(N, B, Fin).transpose(1, 0, 2)


# ----------------------------- parameter init -----------------------------

def init_graph_conv_params(key, in_features, out_features, node_n):
    stdv = 1.0 / math.sqrt(out_features)
    kw, ka, kb = jax.random.split(key, 3)
    return {
        "weight": jax.random.uniform(kw, (in_features, out_features),
                                     minval=-stdv, maxval=stdv, dtype=jnp.float32),
        "att": jax.random.uniform(ka, (node_n, node_n),
                                  minval=-stdv, maxval=stdv, dtype=jnp.float32),
        "bias": jax.random.uniform(kb, (out_features,),
                                   minval=-stdv, maxval=stdv, dtype=jnp.float32),
    }


def init_bn_params(node_n, features):
    # PyTorch BatchNorm1d(node_n * features) defaults, reshaped to (N, F).
    return {
        "gamma": jnp.ones((node_n, features), jnp.float32),
        "beta": jnp.zeros((node_n, features), jnp.float32),
        "mean": jnp.zeros((node_n, features), jnp.float32),
        "var": jnp.ones((node_n, features), jnp.float32),
    }


def init_gcn_params(key, input_feature, hidden_feature, num_stage, node_n):
    keys = jax.random.split(key, 2 + 2 * num_stage)
    params = {
        "gc1": init_graph_conv_params(keys[0], input_feature, hidden_feature, node_n),
        "bn": init_bn_params(node_n, hidden_feature),
        "gcbs": [],
        "gc7": init_graph_conv_params(keys[1], hidden_feature, input_feature, node_n),
    }
    for s in range(num_stage):
        params["gcbs"].append({
            "gc1": init_graph_conv_params(keys[2 + 2 * s], hidden_feature,
                                          hidden_feature, node_n),
            "bn1": init_bn_params(node_n, hidden_feature),
            "gc2": init_graph_conv_params(keys[3 + 2 * s], hidden_feature,
                                          hidden_feature, node_n),
            "bn2": init_bn_params(node_n, hidden_feature),
        })
    return params


# ----------------------------- pure-JAX reference -----------------------------

def _ref_gc(x, p):
    return jnp.einsum("nm,bmf->bnf", p["att"], x @ p["weight"]) + p["bias"]


def _ref_bn_tanh(x, bn):
    y = (x - bn["mean"]) * jax.lax.rsqrt(bn["var"] + BN_EPS) * bn["gamma"] + bn["beta"]
    return jnp.tanh(y)


def gcn_forward_ref(params, x):
    y = _ref_bn_tanh(_ref_gc(x, params["gc1"]), params["bn"])
    for blk in params["gcbs"]:
        x_blk = y
        y1 = _ref_bn_tanh(_ref_gc(y, blk["gc1"]), blk["bn1"])
        y = _ref_bn_tanh(_ref_gc(y1, blk["gc2"]), blk["bn2"]) + x_blk
    return _ref_gc(y, params["gc7"]) + x


# ----------------------------- main -----------------------------

if __name__ == "__main__":
    B, NODE_N = 2, 48
    INPUT_FEATURE, HIDDEN_FEATURE, NUM_STAGE = 16, 32, 1
    P_DROPOUT = 0.5  # unused in eval mode

    key = jax.random.PRNGKey(0)
    k_param, k_x = jax.random.split(key)
    params = init_gcn_params(k_param, INPUT_FEATURE, HIDDEN_FEATURE, NUM_STAGE, NODE_N)
    x = jax.random.normal(k_x, (B, NODE_N, INPUT_FEATURE), dtype=jnp.float32)

    fwd = jax.jit(gcn_forward)
    out = fwd(params, x)
    jax.block_until_ready(out)

    ref = gcn_forward_ref(params, x)
    assert out.shape == (B, NODE_N, INPUT_FEATURE)
    assert jnp.allclose(out, ref, atol=1e-4, rtol=1e-4), "Pallas output mismatch vs reference"

    print("KERNEL_OK")
</pallas_src>

<mosaic_0001>
module attributes {stable_mosaic.version = 11 : i64} {
  func.func @kernel(%arg0: memref<48x32xf32, #tpu.memory_space<vmem>>, %arg1: memref<32x64xf32, #tpu.memory_space<vmem>>, %arg2: memref<48x48xf32, #tpu.memory_space<vmem>>, %arg3: memref<1x64xf32, #tpu.memory_space<vmem>>, %arg4: memref<48x64xf32, #tpu.memory_space<vmem>>, %arg5: memref<48x64xf32, #tpu.memory_space<vmem>>, %arg6: memref<64x64xf32, #tpu.memory_space<vmem>>, %arg7: memref<48x48xf32, #tpu.memory_space<vmem>>, %arg8: memref<1x64xf32, #tpu.memory_space<vmem>>, %arg9: memref<48x64xf32, #tpu.memory_space<vmem>>, %arg10: memref<48x64xf32, #tpu.memory_space<vmem>>, %arg11: memref<64x64xf32, #tpu.memory_space<vmem>>, %arg12: memref<48x48xf32, #tpu.memory_space<vmem>>, %arg13: memref<1x64xf32, #tpu.memory_space<vmem>>, %arg14: memref<48x64xf32, #tpu.memory_space<vmem>>, %arg15: memref<48x64xf32, #tpu.memory_space<vmem>>, %arg16: memref<64x32xf32, #tpu.memory_space<vmem>>, %arg17: memref<48x48xf32, #tpu.memory_space<vmem>>, %arg18: memref<1x32xf32, #tpu.memory_space<vmem>>, %arg19: memref<48x32xf32, #tpu.memory_space<vmem>>) attributes {dimension_semantics = [], scalar_prefetch = 0 : i64, scratch_operands = 0 : i64, tpu.core_type = #tpu.core_type<tc>} {
    %c0 = arith.constant 0 : index
    %c0_0 = arith.constant 0 : index
    %0 = vector.load %arg0[%c0, %c0_0] : memref<48x32xf32, #tpu.memory_space<vmem>>, vector<48x32xf32>
    %c0_1 = arith.constant 0 : index
    %c0_2 = arith.constant 0 : index
    %1 = vector.load %arg1[%c0_1, %c0_2] : memref<32x64xf32, #tpu.memory_space<vmem>>, vector<32x64xf32>
    %c0_3 = arith.constant 0 : index
    %c0_4 = arith.constant 0 : index
    %2 = vector.load %arg2[%c0_3, %c0_4] : memref<48x48xf32, #tpu.memory_space<vmem>>, vector<48x48xf32>
    %c0_5 = arith.constant 0 : index
    %c0_6 = arith.constant 0 : index
    %3 = vector.load %arg3[%c0_5, %c0_6] : memref<1x64xf32, #tpu.memory_space<vmem>>, vector<1x64xf32>
    %c0_7 = arith.constant 0 : index
    %c0_8 = arith.constant 0 : index
    %4 = vector.load %arg4[%c0_7, %c0_8] : memref<48x64xf32, #tpu.memory_space<vmem>>, vector<48x64xf32>
    %c0_9 = arith.constant 0 : index
    %c0_10 = arith.constant 0 : index
    %5 = vector.load %arg5[%c0_9, %c0_10] : memref<48x64xf32, #tpu.memory_space<vmem>>, vector<48x64xf32>
    %cst = arith.constant dense<0.000000e+00> : vector<48x32xf32>
    %6 = tpu.matmul %2, %0, %cst {dimension_numbers = #tpu.dot_dimension_numbers<[1], [0], [0], [1], [0, 0, 1, 1], [], []>} : vector<48x48xf32>, vector<48x32xf32>, vector<48x32xf32> -> vector<48x32xf32>
    %cst_11 = arith.constant dense<0.000000e+00> : vector<48x64xf32>
    %7 = tpu.matmul %6, %1, %cst_11 {dimension_numbers = #tpu.dot_dimension_numbers<[1], [0], [0], [1], [0, 0, 1, 1], [], []>} : vector<48x32xf32>, vector<32x64xf32>, vector<48x64xf32> -> vector<48x64xf32>
    %8 = vector.broadcast %3 : vector<1x64xf32> to vector<48x64xf32>
    %9 = arith.addf %7, %8 : vector<48x64xf32>
    %10 = arith.mulf %9, %4 : vector<48x64xf32>
    %11 = arith.addf %10, %5 : vector<48x64xf32>
    %12 = math.tanh %11 : vector<48x64xf32>
    %c0_12 = arith.constant 0 : index
    %c0_13 = arith.constant 0 : index
    %13 = vector.load %arg6[%c0_12, %c0_13] : memref<64x64xf32, #tpu.memory_space<vmem>>, vector<64x64xf32>
    %c0_14 = arith.constant 0 : index
    %c0_15 = arith.constant 0 : index
    %14 = vector.load %arg7[%c0_14, %c0_15] : memref<48x48xf32, #tpu.memory_space<vmem>>, vector<48x48xf32>
    %c0_16 = arith.constant 0 : index
    %c0_17 = arith.constant 0 : index
    %15 = vector.load %arg8[%c0_16, %c0_17] : memref<1x64xf32, #tpu.memory_space<vmem>>, vector<1x64xf32>
    %c0_18 = arith.constant 0 : index
    %c0_19 = arith.constant 0 : index
    %16 = vector.load %arg9[%c0_18, %c0_19] : memref<48x64xf32, #tpu.memory_space<vmem>>, vector<48x64xf32>
    %c0_20 = arith.constant 0 : index
    %c0_21 = arith.constant 0 : index
    %17 = vector.load %arg10[%c0_20, %c0_21] : memref<48x64xf32, #tpu.memory_space<vmem>>, vector<48x64xf32>
    %c0_22 = arith.constant 0 : index
    %c0_23 = arith.constant 0 : index
    %18 = vector.load %arg11[%c0_22, %c0_23] : memref<64x64xf32, #tpu.memory_space<vmem>>, vector<64x64xf32>
    %c0_24 = arith.constant 0 : index
    %c0_25 = arith.constant 0 : index
    %19 = vector.load %arg12[%c0_24, %c0_25] : memref<48x48xf32, #tpu.memory_space<vmem>>, vector<48x48xf32>
    %c0_26 = arith.constant 0 : index
    %c0_27 = arith.constant 0 : index
    %20 = vector.load %arg13[%c0_26, %c0_27] : memref<1x64xf32, #tpu.memory_space<vmem>>, vector<1x64xf32>
    %c0_28 = arith.constant 0 : index
    %c0_29 = arith.constant 0 : index
    %21 = vector.load %arg14[%c0_28, %c0_29] : memref<48x64xf32, #tpu.memory_space<vmem>>, vector<48x64xf32>
    %c0_30 = arith.constant 0 : index
    %c0_31 = arith.constant 0 : index
    %22 = vector.load %arg15[%c0_30, %c0_31] : memref<48x64xf32, #tpu.memory_space<vmem>>, vector<48x64xf32>
    %cst_32 = arith.constant dense<0.000000e+00> : vector<48x64xf32>
    %23 = tpu.matmul %14, %12, %cst_32 {dimension_numbers = #tpu.dot_dimension_numbers<[1], [0], [0], [1], [0, 0, 1, 1], [], []>} : vector<48x48xf32>, vector<48x64xf32>, vector<48x64xf32> -> vector<48x64xf32>
    %cst_33 = arith.constant dense<0.000000e+00> : vector<48x64xf32>
    %24 = tpu.matmul %23, %13, %cst_33 {dimension_numbers = #tpu.dot_dimension_numbers<[1], [0], [0], [1], [0, 0, 1, 1], [], []>} : vector<48x64xf32>, vector<64x64xf32>, vector<48x64xf32> -> vector<48x64xf32>
    %25 = vector.broadcast %15 : vector<1x64xf32> to vector<48x64xf32>
    %26 = arith.addf %24, %25 : vector<48x64xf32>
    %27 = arith.mulf %26, %16 : vector<48x64xf32>
    %28 = arith.addf %27, %17 : vector<48x64xf32>
    %29 = math.tanh %28 : vector<48x64xf32>
    %cst_34 = arith.constant dense<0.000000e+00> : vector<48x64xf32>
    %30 = tpu.matmul %19, %29, %cst_34 {dimension_numbers = #tpu.dot_dimension_numbers<[1], [0], [0], [1], [0, 0, 1, 1], [], []>} : vector<48x48xf32>, vector<48x64xf32>, vector<48x64xf32> -> vector<48x64xf32>
    %cst_35 = arith.constant dense<0.000000e+00> : vector<48x64xf32>
    %31 = tpu.matmul %30, %18, %cst_35 {dimension_numbers = #tpu.dot_dimension_numbers<[1], [0], [0], [1], [0, 0, 1, 1], [], []>} : vector<48x64xf32>, vector<64x64xf32>, vector<48x64xf32> -> vector<48x64xf32>
    %32 = vector.broadcast %20 : vector<1x64xf32> to vector<48x64xf32>
    %33 = arith.addf %31, %32 : vector<48x64xf32>
    %34 = arith.mulf %33, %21 : vector<48x64xf32>
    %35 = arith.addf %34, %22 : vector<48x64xf32>
    %36 = math.tanh %35 : vector<48x64xf32>
    %37 = arith.addf %36, %12 : vector<48x64xf32>
    %c0_36 = arith.constant 0 : index
    %c0_37 = arith.constant 0 : index
    %38 = vector.load %arg16[%c0_36, %c0_37] : memref<64x32xf32, #tpu.memory_space<vmem>>, vector<64x32xf32>
    %c0_38 = arith.constant 0 : index
    %c0_39 = arith.constant 0 : index
    %39 = vector.load %arg17[%c0_38, %c0_39] : memref<48x48xf32, #tpu.memory_space<vmem>>, vector<48x48xf32>
    %c0_40 = arith.constant 0 : index
    %c0_41 = arith.constant 0 : index
    %40 = vector.load %arg18[%c0_40, %c0_41] : memref<1x32xf32, #tpu.memory_space<vmem>>, vector<1x32xf32>
    %cst_42 = arith.constant dense<0.000000e+00> : vector<48x32xf32>
    %41 = tpu.matmul %37, %38, %cst_42 {dimension_numbers = #tpu.dot_dimension_numbers<[1], [0], [0], [1], [0, 0, 1, 1], [], []>} : vector<48x64xf32>, vector<64x32xf32>, vector<48x32xf32> -> vector<48x32xf32>
    %cst_43 = arith.constant dense<0.000000e+00> : vector<48x32xf32>
    %42 = tpu.matmul %39, %41, %cst_43 {dimension_numbers = #tpu.dot_dimension_numbers<[1], [0], [0], [1], [0, 0, 1, 1], [], []>} : vector<48x48xf32>, vector<48x32xf32>, vector<48x32xf32> -> vector<48x32xf32>
    %43 = vector.broadcast %40 : vector<1x32xf32> to vector<48x32xf32>
    %44 = arith.addf %42, %43 : vector<48x32xf32>
    %45 = arith.addf %44, %0 : vector<48x32xf32>
    %c0_44 = arith.constant 0 : index
    %c0_45 = arith.constant 0 : index
    %46 = vector.load %arg19[%c0_44, %c0_45] : memref<48x32xf32, #tpu.memory_space<vmem>>, vector<48x32xf32>
    tpu.vector_store %arg19[%c0_44, %c0_45], %45 {strides = array<i32>} : memref<48x32xf32, #tpu.memory_space<vmem>>, vector<48x32xf32>,
    return
  }
}

</mosaic_0001>

<llo_original>
// kernel: gcn_forward.1
$region0: #{gcn_forward.1}
  #allocation0 [shape = 'u32[]', space=smem, size = 0x4, offset = 0x4, fixed_abs, tag = 'smem constant byte address 0x4 - core index']
  #allocation1 [shape = 'u32[144,128]{1,0:T(1,128)}', space=vmem, size = 0x12000, scoped, tag = 'internal scratch']
  %s0 = inlined_call_operand.vmem [shape: f32[48,32], index: 0, kind: input, shape index: {}]
  %s1 = inlined_call_operand.vmem [shape: f32[32,64], index: 1, kind: input, shape index: {}]
  %s2 = inlined_call_operand.vmem [shape: f32[48,48], index: 2, kind: input, shape index: {}]
  %s3 = inlined_call_operand.vmem [shape: f32[1,64], index: 3, kind: input, shape index: {}]
  %s4 = inlined_call_operand.vmem [shape: f32[48,64], index: 4, kind: input, shape index: {}]
  %s5 = inlined_call_operand.vmem [shape: f32[48,64], index: 5, kind: input, shape index: {}]
  %s6 = inlined_call_operand.vmem [shape: f32[64,64], index: 6, kind: input, shape index: {}]
  %s7 = inlined_call_operand.vmem [shape: f32[48,48], index: 7, kind: input, shape index: {}]
  %s8 = inlined_call_operand.vmem [shape: f32[1,64], index: 8, kind: input, shape index: {}]
  %s9 = inlined_call_operand.vmem [shape: f32[48,64], index: 9, kind: input, shape index: {}]
  %s10 = inlined_call_operand.vmem [shape: f32[48,64], index: 10, kind: input, shape index: {}]
  %s11 = inlined_call_operand.vmem [shape: f32[64,64], index: 11, kind: input, shape index: {}]
  %s12 = inlined_call_operand.vmem [shape: f32[48,48], index: 12, kind: input, shape index: {}]
  %s13 = inlined_call_operand.vmem [shape: f32[1,64], index: 13, kind: input, shape index: {}]
  %s14 = inlined_call_operand.vmem [shape: f32[48,64], index: 14, kind: input, shape index: {}]
  %s15 = inlined_call_operand.vmem [shape: f32[48,64], index: 15, kind: input, shape index: {}]
  %s16 = inlined_call_operand.vmem [shape: f32[64,32], index: 16, kind: input, shape index: {}]
  %s17 = inlined_call_operand.vmem [shape: f32[48,48], index: 17, kind: input, shape index: {}]
  %s18 = inlined_call_operand.vmem [shape: f32[1,32], index: 18, kind: input, shape index: {}]
  %s19 = inlined_call_operand.vmem [shape: f32[48,32], index: 19, kind: output, shape index: {}]
  %s20 = sld [smem:[#allocation0]]
  $region86: #{gcn_forward.1} parent=0
    _
  %s22 = ssub.s32 1, %s20
  %s23 = scalar_select 0, %s22, %s20
  // Predicated region
  $region2: #{gcn_forward.1} parent=0 // pred_check
    _
  $region3: #{gcn_forward.1} parent=0 // pred_check_branch
    %25 = sbr.rel (0) target = $region5
  $region4: #{gcn_forward.1} parent=0 // pred_region
    _
  $region5: #{gcn_forward.1} parent=0 // pred_fallthru
    _
  // Predicated region
  $region6: #{gcn_forward.1} parent=0 // pred_check
    _
  $region7: #{gcn_forward.1} parent=0 // pred_check_branch
    %27 = sbr.rel (0) target = $region9
  $region8: #{gcn_forward.1} parent=0 // pred_region
    _
  $region9: #{gcn_forward.1} parent=0 // pred_fallthru
    _
  // Predicated region
  $region10: #{gcn_forward.1} parent=0 // pred_check
    _
  $region11: #{gcn_forward.1} parent=0 // pred_check_branch
    %29 = sbr.rel (0) target = $region13
  $region12: #{gcn_forward.1} parent=0 // pred_region
    _
  $region13: #{gcn_forward.1} parent=0 // pred_fallthru
    _
  // Predicated region
  $region14: #{gcn_forward.1} parent=0 // pred_check
    _
  $region15: #{gcn_forward.1} parent=0 // pred_check_branch
    %31 = sbr.rel (0) target = $region17
  $region16: #{gcn_forward.1} parent=0 // pred_region
    _
  $region17: #{gcn_forward.1} parent=0 // pred_fallthru
    _
  // Predicated region
  $region18: #{gcn_forward.1} parent=0 // pred_check
    _
  $region19: #{gcn_forward.1} parent=0 // pred_check_branch
    %33 = sbr.rel (0) target = $region21
  $region20: #{gcn_forward.1} parent=0 // pred_region
    _
  $region21: #{gcn_forward.1} parent=0 // pred_fallthru
    _
  // Predicated region
  $region22: #{gcn_forward.1} parent=0 // pred_check
    _
  $region23: #{gcn_forward.1} parent=0 // pred_check_branch
    %35 = sbr.rel (0) target = $region25
  $region24: #{gcn_forward.1} parent=0 // pred_region
    _
  $region25: #{gcn_forward.1} parent=0 // pred_fallthru
    _
  // Predicated region
  $region26: #{gcn_forward.1} parent=0 // pred_check
    _
  $region27: #{gcn_forward.1} parent=0 // pred_check_branch
    %37 = sbr.rel (0) target = $region29
  $region28: #{gcn_forward.1} parent=0 // pred_region
    _
  $region29: #{gcn_forward.1} parent=0 // pred_fallthru
    _
  // Predicated region
  $region30: #{gcn_forward.1} parent=0 // pred_check
    _
  $region31: #{gcn_forward.1} parent=0 // pred_check_branch
    %39 = sbr.rel (0) target = $region33
  $region32: #{gcn_forward.1} parent=0 // pred_region
    _
  $region33: #{gcn_forward.1} parent=0 // pred_fallthru
    _
  // Predicated region
  $region34: #{gcn_forward.1} parent=0 // pred_check
    _
  $region35: #{gcn_forward.1} parent=0 // pred_check_branch
    %41 = sbr.rel (0) target = $region37
  $region36: #{gcn_forward.1} parent=0 // pred_region
    _
  $region37: #{gcn_forward.1} parent=0 // pred_fallthru
    _
  // Predicated region
  $region38: #{gcn_forward.1} parent=0 // pred_check
    _
  $region39: #{gcn_forward.1} parent=0 // pred_check_branch
    %43 = sbr.rel (0) target = $region41
  $region40: #{gcn_forward.1} parent=0 // pred_region
    _
  $region41: #{gcn_forward.1} parent=0 // pred_fallthru
    _
  // Predicated region
  $region42: #{gcn_forward.1} parent=0 // pred_check
    _
  $region43: #{gcn_forward.1} parent=0 // pred_check_branch
    %45 = sbr.rel (0) target = $region45
  $region44: #{gcn_forward.1} parent=0 // pred_region
    _
  $region45: #{gcn_forward.1} parent=0 // pred_fallthru
    _
  // Predicated region
  $region46: #{gcn_forward.1} parent=0 // pred_check
    _
  $region47: #{gcn_forward.1} parent=0 // pred_check_branch
    %47 = sbr.rel (0) target = $region49
  $region48: #{gcn_forward.1} parent=0 // pred_region
    _
  $region49: #{gcn_forward.1} parent=0 // pred_fallthru
    _
  // Predicated region
  $region50: #{gcn_forward.1} parent=0 // pred_check
    _
  $region51: #{gcn_forward.1} parent=0 // pred_check_branch
    %49 = sbr.rel (0) target = $region53
  $region52: #{gcn_forward.1} parent=0 // pred_region
    _
  $region53: #{gcn_forward.1} parent=0 // pred_fallthru
    _
  // Predicated region
  $region54: #{gcn_forward.1} parent=0 // pred_check
    _
  $region55: #{gcn_forward.1} parent=0 // pred_check_branch
    %51 = sbr.rel (0) target = $region57
  $region56: #{gcn_forward.1} parent=0 // pred_region
    _
  $region57: #{gcn_forward.1} parent=0 // pred_fallthru
    _
  // Predicated region
  $region58: #{gcn_forward.1} parent=0 // pred_check
    _
  $region59: #{gcn_forward.1} parent=0 // pred_check_branch
    %53 = sbr.rel (0) target = $region61
  $region60: #{gcn_forward.1} parent=0 // pred_region
    _
  $region61: #{gcn_forward.1} parent=0 // pred_fallthru
    _
  // Predicated region
  $region62: #{gcn_forward.1} parent=0 // pred_check
    _
  $region63: #{gcn_forward.1} parent=0 // pred_check_branch
    %55 = sbr.rel (0) target = $region65
  $region64: #{gcn_forward.1} parent=0 // pred_region
    _
  $region65: #{gcn_forward.1} parent=0 // pred_fallthru
    _
  // Predicated region
  $region66: #{gcn_forward.1} parent=0 // pred_check
    _
  $region67: #{gcn_forward.1} parent=0 // pred_check_branch
    %57 = sbr.rel (0) target = $region69
  $region68: #{gcn_forward.1} parent=0 // pred_region
    _
  $region69: #{gcn_forward.1} parent=0 // pred_fallthru
    _
  // Predicated region
  $region70: #{gcn_forward.1} parent=0 // pred_check
    _
  $region71: #{gcn_forward.1} parent=0 // pred_check_branch
    %59 = sbr.rel (0) target = $region73
  $region72: #{gcn_forward.1} parent=0 // pred_region
    _
  $region73: #{gcn_forward.1} parent=0 // pred_fallthru
    _
  // Predicated region
  $region74: #{gcn_forward.1} parent=0 // pred_check
    _
  $region75: #{gcn_forward.1} parent=0 // pred_check_branch
    %61 = sbr.rel (0) target = $region77
  $region76: #{gcn_forward.1} parent=0 // pred_region
    _
  $region77: #{gcn_forward.1} parent=0 // pred_fallthru
    _
  %v62 = vld [vmem:[%s0] sm:$0xff]
  %v63 = vld [vmem:[%s0 + $0x8] sm:$0xff]
  %v64 = vld [vmem:[%s0 + $0x10] sm:$0xff]
  %v65 = vld [vmem:[%s0 + $0x18] sm:$0xff]
  %v66 = vld [vmem:[%s0 + $0x20] sm:$0xff]
  %v67 = vld [vmem:[%s0 + $0x28] sm:$0xff]
  %v68 = vld [vmem:[%s1] sm:$0xff]
  %v69 = vld [vmem:[%s1 + $0x8] sm:$0xff]
  %v70 = vld [vmem:[%s1 + $0x10] sm:$0xff]
  %v71 = vld [vmem:[%s1 + $0x18] sm:$0xff]
  %v72 = vld [vmem:[%s2] sm:$0xff]
  %v73 = vld [vmem:[%s2 + $0x8] sm:$0xff]
  %v74 = vld [vmem:[%s2 + $0x10] sm:$0xff]
  %v75 = vld [vmem:[%s2 + $0x18] sm:$0xff]
  %v76 = vld [vmem:[%s2 + $0x20] sm:$0xff]
  %v77 = vld [vmem:[%s2 + $0x28] sm:$0xff]
  %v78 = vld [vmem:[%s3] sm:$0x1]
  %v79 = vld [vmem:[%s4] sm:$0xff]
  %v80 = vld [vmem:[%s4 + $0x8] sm:$0xff]
  %v81 = vld [vmem:[%s4 + $0x10] sm:$0xff]
  %v82 = vld [vmem:[%s4 + $0x18] sm:$0xff]
  %v83 = vld [vmem:[%s4 + $0x20] sm:$0xff]
  %v84 = vld [vmem:[%s4 + $0x28] sm:$0xff]
  %v85 = vld [vmem:[%s5] sm:$0xff]
  %v86 = vld [vmem:[%s5 + $0x8] sm:$0xff]
  %v87 = vld [vmem:[%s5 + $0x10] sm:$0xff]
  %v88 = vld [vmem:[%s5 + $0x18] sm:$0xff]
  %v89 = vld [vmem:[%s5 + $0x20] sm:$0xff]
  %v90 = vld [vmem:[%s5 + $0x28] sm:$0xff]
  %vm91 = vcmask 392192
  %v93 = vsel %vm91, %v72, 0
  %v96 = vsel %vm91, %v73, 0
  %v99 = vsel %vm91, %v74, 0
  %v102 = vsel %vm91, %v75, 0
  %v105 = vsel %vm91, %v76, 0
  %v108 = vsel %vm91, %v77, 0
  %110 = vmatprep.subr.mxu0 0.0
  %111 = vmatpush1.msra.mxu0 0.0
  %112 = vmatprep.subr.mxu0 0.0
  %113 = vmatpush1.msra.mxu0 0.0
  %114 = vmatprep.subr.mxu0 0.0
  %115 = vmatpush1.msra.mxu0 0.0
  %116 = vmatprep.subr.mxu0 0.0
  %117 = vmatpush1.msra.mxu0 0.0
  %118 = vmatprep.subr.mxu0 0.0
  %119 = vmatpush1.msra.mxu0 0.0
  %120 = vmatprep.subr.mxu0 0.0
  %121 = vmatpush1.msra.mxu0 0.0
  %122 = vmatprep.subr.mxu0 0.0
  %123 = vmatpush1.msra.mxu0 0.0
  %124 = vmatprep.subr.mxu0 0.0
  %125 = vmatpush1.msra.mxu0 0.0
  %126 = vmatprep.subr.mxu0 0.0
  %127 = vmatpush1.msra.mxu0 0.0
  %128 = vmatprep.subr.mxu0 0.0
  %129 = vmatpush1.msra.mxu0 0.0
  %130 = vmatprep.subr.mxu0 0.0
  %131 = vmatpush1.msra.mxu0 %v67
  %132 = vmatprep.subr.mxu0 0.0
  %133 = vmatpush1.msra.mxu0 %v66
  %134 = vmatprep.subr.mxu0 0.0
  %135 = vmatpush1.msra.mxu0 %v65
  %136 = vmatprep.subr.mxu0 0.0
  %137 = vmatpush1.msra.mxu0 %v64
  %138 = vmatprep.subr.mxu0 0.0
  %139 = vmatpush1.msra.mxu0 %v63
  %140 = vmatprep.subr.mxu0 0.0
  %141 = vmatpush1.msra.mxu0 %v62
  %142 = vmatprep.subr.mxu0 0.0
  %143 = vmatpush2.msra.mxu0 0.0
  %144 = vmatprep.subr.mxu0 0.0
  %145 = vmatpush2.msra.mxu0 0.0
  %146 = vmatprep.subr.mxu0 0.0
  %147 = vmatpush2.msra.mxu0 0.0
  %148 = vmatprep.subr.mxu0 0.0
  %149 = vmatpush2.msra.mxu0 0.0
  %150 = vmatprep.subr.mxu0 0.0
  %151 = vmatpush2.msra.mxu0 0.0
  %152 = vmatprep.subr.mxu0 0.0
  %153 = vmatpush2.msra.mxu0 0.0
  %154 = vmatprep.subr.mxu0 0.0
  %155 = vmatpush2.msra.mxu0 0.0
  %156 = vmatprep.subr.mxu0 0.0
  %157 = vmatpush2.msra.mxu0 0.0
  %158 = vmatprep.subr.mxu0 0.0
  %159 = vmatpush2.msra.mxu0 0.0
  %160 = vmatprep.subr.mxu0 0.0
  %161 = vmatpush2.msra.mxu0 0.0
  %162 = vmatprep.subr.mxu0 0.0
  %163 = vmatpush2.msra.mxu0 0.0
  %164 = vmatprep.subr.mxu0 0.0
  %165 = vmatpush2.msra.mxu0 0.0
  %166 = vmatprep.subr.mxu0 0.0
  %167 = vmatpush2.msra.mxu0 0.0
  %168 = vmatprep.subr.mxu0 0.0
  %169 = vmatpush2.msra.mxu0 0.0
  %170 = vmatprep.subr.mxu0 0.0
  %171 = vmatpush2.msra.mxu0 0.0
  %172 = vmatprep.subr.mxu0 0.0
  %173 = vmatpush2.msra.mxu0 0.0
  %174 = vmatprep.mubr.f32.mxu0 0.0
  %175 = vmatmul.mubr.f32.gmra.mxu0 %v93
  %v176 = vpop.f32.mrf.mxu0
  %v177 = vadd.f32 0.0, %v176
  %v178 = vpop.f32.mrf.mxu0
  %179 = vmatprep.mubr.f32.mxu0 0.0
  %180 = vmatmul.mubr.f32.gmra.mxu0 %v96
  %v181 = vpop.f32.mrf.mxu0
  %v182 = vadd.f32 0.0, %v181
  %v183 = vpop.f32.mrf.mxu0
  %184 = vmatprep.mubr.f32.mxu0 0.0
  %185 = vmatmul.mubr.f32.gmra.mxu0 %v99
  %v186 = vpop.f32.mrf.mxu0
  %v187 = vadd.f32 0.0, %v186
  %v188 = vpop.f32.mrf.mxu0
  %189 = vmatprep.mubr.f32.mxu0 0.0
  %190 = vmatmul.mubr.f32.gmra.mxu0 %v102
  %v191 = vpop.f32.mrf.mxu0
  %v192 = vadd.f32 0.0, %v191
  %v193 = vpop.f32.mrf.mxu0
  %194 = vmatprep.mubr.f32.mxu0 0.0
  %195 = vmatmul.mubr.f32.gmra.mxu0 %v105
  %v196 = vpop.f32.mrf.mxu0
  %v197 = vadd.f32 0.0, %v196
  %v198 = vpop.f32.mrf.mxu0
  %199 = vmatprep.mubr.f32.mxu0 0.0
  %200 = vmatmul.mubr.f32.gmra.mxu0 %v108
  %v201 = vpop.f32.mrf.mxu0
  %v202 = vadd.f32 0.0, %v201
  %v203 = vpop.f32.mrf.mxu0
  %204 = vdwg.mxu0
  %v206 = vlaneseq
  %v207 = vshrl.u32 %v206, 7
  %v208 = vsub.s32 0, %v207
  %v209 = vrot.slane %v78, %v208
  %vm211 = vcmask 261120
  %v213 = vsel %vm211, %v177, 0
  %v216 = vsel %vm211, %v182, 0
  %v219 = vsel %vm211, %v187, 0
  %v222 = vsel %vm211, %v192, 0
  %v225 = vsel %vm211, %v197, 0
  %v228 = vsel %vm211, %v202, 0
  %230 = vmatprep.subr.mxu0 0.0
  %231 = vmatpush1.msra.mxu0 0.0
  %232 = vmatprep.subr.mxu0 0.0
  %233 = vmatpush1.msra.mxu0 0.0
  %234 = vmatprep.subr.mxu0 0.0
  %235 = vmatpush1.msra.mxu0 0.0
  %236 = vmatprep.subr.mxu0 0.0
  %237 = vmatpush1.msra.mxu0 0.0
  %238 = vmatprep.subr.mxu0 0.0
  %239 = vmatpush1.msra.mxu0 0.0
  %240 = vmatprep.subr.mxu0 0.0
  %241 = vmatpush1.msra.mxu0 0.0
  %242 = vmatprep.subr.mxu0 0.0
  %243 = vmatpush1.msra.mxu0 0.0
  %244 = vmatprep.subr.mxu0 0.0
  %245 = vmatpush1.msra.mxu0 0.0
  %246 = vmatprep.subr.mxu0 0.0
  %247 = vmatpush1.msra.mxu0 0.0
  %248 = vmatprep.subr.mxu0 0.0
  %249 = vmatpush1.msra.mxu0 0.0
  %250 = vmatprep.subr.mxu0 0.0
  %251 = vmatpush1.msra.mxu0 0.0
  %252 = vmatprep.subr.mxu0 0.0
  %253 = vmatpush1.msra.mxu0 0.0
  %254 = vmatprep.subr.mxu0 0.0
  %255 = vmatpush1.msra.mxu0 %v71
  %256 = vmatprep.subr.mxu0 0.0
  %257 = vmatpush1.msra.mxu0 %v70
  %258 = vmatprep.subr.mxu0 0.0
  %259 = vmatpush1.msra.mxu0 %v69
  %260 = vmatprep.subr.mxu0 0.0
  %261 = vmatpush1.msra.mxu0 %v68
  %262 = vmatprep.subr.mxu0 0.0
  %263 = vmatpush2.msra.mxu0 0.0
  %264 = vmatprep.subr.mxu0 0.0
  %265 = vmatpush2.msra.mxu0 0.0
  %266 = vmatprep.subr.mxu0 0.0
  %267 = vmatpush2.msra.mxu0 0.0
  %268 = vmatprep.subr.mxu0 0.0
  %269 = vmatpush2.msra.mxu0 0.0
  %270 = vmatprep.subr.mxu0 0.0
  %271 = vmatpush2.msra.mxu0 0.0
  %272 = vmatprep.subr.mxu0 0.0
  %273 = vmatpush2.msra.mxu0 0.0
  %274 = vmatprep.subr.mxu0 0.0
  %275 = vmatpush2.msra.mxu0 0.0
  %276 = vmatprep.subr.mxu0 0.0
  %277 = vmatpush2.msra.mxu0 0.0
  %278 = vmatprep.subr.mxu0 0.0
  %279 = vmatpush2.msra.mxu0 0.0
  %280 = vmatprep.subr.mxu0 0.0
  %281 = vmatpush2.msra.mxu0 0.0
  %282 = vmatprep.subr.mxu0 0.0
  %283 = vmatpush2.msra.mxu0 0.0
  %284 = vmatprep.subr.mxu0 0.0
  %285 = vmatpush2.msra.mxu0 0.0
  %286 = vmatprep.subr.mxu0 0.0
  %287 = vmatpush2.msra.mxu0 0.0
  %288 = vmatprep.subr.mxu0 0.0
  %289 = vmatpush2.msra.mxu0 0.0
  %290 = vmatprep.subr.mxu0 0.0
  %291 = vmatpush2.msra.mxu0 0.0
  %292 = vmatprep.subr.mxu0 0.0
  %293 = vmatpush2.msra.mxu0 0.0
  %294 = vmatprep.mubr.f32.mxu0 0.0
  %295 = vmatmul.mubr.f32.gmra.mxu0 %v213
  %v296 = vpop.f32.mrf.mxu0
  %v297 = vadd.f32 %v209, %v296
  %v298 = vpop.f32.mrf.mxu0
  %299 = vmatprep.mubr.f32.mxu0 0.0
  %300 = vmatmul.mubr.f32.gmra.mxu0 %v216
  %v301 = vpop.f32.mrf.mxu0
  %v302 = vadd.f32 %v209, %v301
  %v303 = vpop.f32.mrf.mxu0
  %304 = vmatprep.mubr.f32.mxu0 0.0
  %305 = vmatmul.mubr.f32.gmra.mxu0 %v219
  %v306 = vpop.f32.mrf.mxu0
  %v307 = vadd.f32 %v209, %v306
  %v308 = vpop.f32.mrf.mxu0
  %309 = vmatprep.mubr.f32.mxu0 0.0
  %310 = vmatmul.mubr.f32.gmra.mxu0 %v222
  %v311 = vpop.f32.mrf.mxu0
  %v312 = vadd.f32 %v209, %v311
  %v313 = vpop.f32.mrf.mxu0
  %314 = vmatprep.mubr.f32.mxu0 0.0
  %315 = vmatmul.mubr.f32.gmra.mxu0 %v225
  %v316 = vpop.f32.mrf.mxu0
  %v317 = vadd.f32 %v209, %v316
  %v318 = vpop.f32.mrf.mxu0
  %319 = vmatprep.mubr.f32.mxu0 0.0
  %320 = vmatmul.mubr.f32.gmra.mxu0 %v228
  %v321 = vpop.f32.mrf.mxu0
  %v322 = vadd.f32 %v209, %v321
  %v323 = vpop.f32.mrf.mxu0
  %324 = vdwg.mxu0
  %v325 = vmul.f32 %v297, %v79
  %v326 = vmul.f32 %v302, %v80
  %v327 = vmul.f32 %v307, %v81
  %v328 = vmul.f32 %v312, %v82
  %v329 = vmul.f32 %v317, %v83
  %v330 = vmul.f32 %v322, %v84
  %v331 = vadd.f32 %v325, %v85
  %v332 = vadd.f32 %v326, %v86
  %v333 = vadd.f32 %v327, %v87
  %v334 = vadd.f32 %v328, %v88
  %v335 = vadd.f32 %v329, %v89
  %v336 = vadd.f32 %v330, %v90
  %v337 = vtanh.pop %v331
  %v338 = vtanh.pop %v332
  %v339 = vtanh.pop %v333
  %v340 = vtanh.pop %v334
  %v341 = vtanh.pop %v335
  %v342 = vtanh.pop %v336
  %v343 = vld [vmem:[%s6] sm:$0xff]
  %v344 = vld [vmem:[%s6 + $0x8] sm:$0xff]
  %v345 = vld [vmem:[%s6 + $0x10] sm:$0xff]
  %v346 = vld [vmem:[%s6 + $0x18] sm:$0xff]
  %v347 = vld [vmem:[%s6 + $0x20] sm:$0xff]
  %v348 = vld [vmem:[%s6 + $0x28] sm:$0xff]
  %v349 = vld [vmem:[%s6 + $0x30] sm:$0xff]
  %v350 = vld [vmem:[%s6 + $0x38] sm:$0xff]
  %v351 = vld [vmem:[%s7] sm:$0xff]
  %v352 = vld [vmem:[%s7 + $0x8] sm:$0xff]
  %v353 = vld [vmem:[%s7 + $0x10] sm:$0xff]
  %v354 = vld [vmem:[%s7 + $0x18] sm:$0xff]
  %v355 = vld [vmem:[%s7 + $0x20] sm:$0xff]
  %v356 = vld [vmem:[%s7 + $0x28] sm:$0xff]
  %v357 = vld [vmem:[%s8] sm:$0x1]
  %v358 = vld [vmem:[%s9] sm:$0xff]
  %v359 = vld [vmem:[%s9 + $0x8] sm:$0xff]
  %v360 = vld [vmem:[%s9 + $0x10] sm:$0xff]
  %v361 = vld [vmem:[%s9 + $0x18] sm:$0xff]
  %v362 = vld [vmem:[%s9 + $0x20] sm:$0xff]
  %v363 = vld [vmem:[%s9 + $0x28] sm:$0xff]
  %v364 = vld [vmem:[%s10] sm:$0xff]
  %v365 = vld [vmem:[%s10 + $0x8] sm:$0xff]
  %v366 = vld [vmem:[%s10 + $0x10] sm:$0xff]
  %v367 = vld [vmem:[%s10 + $0x18] sm:$0xff]
  %v368 = vld [vmem:[%s10 + $0x20] sm:$0xff]
  %v369 = vld [vmem:[%s10 + $0x28] sm:$0xff]
  %v370 = vld [vmem:[%s11] sm:$0xff]
  %v371 = vld [vmem:[%s11 + $0x8] sm:$0xff]
  %v372 = vld [vmem:[%s11 + $0x10] sm:$0xff]
  %v373 = vld [vmem:[%s11 + $0x18] sm:$0xff]
  %v374 = vld [vmem:[%s11 + $0x20] sm:$0xff]
  %v375 = vld [vmem:[%s11 + $0x28] sm:$0xff]
  %v376 = vld [vmem:[%s11 + $0x30] sm:$0xff]
  %v377 = vld [vmem:[%s11 + $0x38] sm:$0xff]
  %v378 = vld [vmem:[%s12] sm:$0xff]
  %v379 = vld [vmem:[%s12 + $0x8] sm:$0xff]
  %v380 = vld [vmem:[%s12 + $0x10] sm:$0xff]
  %v381 = vld [vmem:[%s12 + $0x18] sm:$0xff]
  %v382 = vld [vmem:[%s12 + $0x20] sm:$0xff]
  %v383 = vld [vmem:[%s12 + $0x28] sm:$0xff]
  %v384 = vld [vmem:[%s13] sm:$0x1]
  %v385 = vld [vmem:[%s14] sm:$0xff]
  %v386 = vld [vmem:[%s14 + $0x8] sm:$0xff]
  %v387 = vld [vmem:[%s14 + $0x10] sm:$0xff]
  %v388 = vld [vmem:[%s14 + $0x18] sm:$0xff]
  %v389 = vld [vmem:[%s14 + $0x20] sm:$0xff]
  %v390 = vld [vmem:[%s14 + $0x28] sm:$0xff]
  %v391 = vld [vmem:[%s15] sm:$0xff]
  %v392 = vld [vmem:[%s15 + $0x8] sm:$0xff]
  %v393 = vld [vmem:[%s15 + $0x10] sm:$0xff]
  %v394 = vld [vmem:[%s15 + $0x18] sm:$0xff]
  %v395 = vld [vmem:[%s15 + $0x20] sm:$0xff]
  %v396 = vld [vmem:[%s15 + $0x28] sm:$0xff]
  %v398 = vsel %vm91, %v351, 0
  %v401 = vsel %vm91, %v352, 0
  %v404 = vsel %vm91, %v353, 0
  %v407 = vsel %vm91, %v354, 0
  %v410 = vsel %vm91, %v355, 0
  %v413 = vsel %vm91, %v356, 0
  %415 = vmatprep.subr.mxu0 0.0
  %416 = vmatpush1.msra.mxu0 0.0
  %417 = vmatprep.subr.mxu0 0.0
  %418 = vmatpush1.msra.mxu0 0.0
  %419 = vmatprep.subr.mxu0 0.0
  %420 = vmatpush1.msra.mxu0 0.0
  %421 = vmatprep.subr.mxu0 0.0
  %422 = vmatpush1.msra.mxu0 0.0
  %423 = vmatprep.subr.mxu0 0.0
  %424 = vmatpush1.msra.mxu0 0.0
  %425 = vmatprep.subr.mxu0 0.0
  %426 = vmatpush1.msra.mxu0 0.0
  %427 = vmatprep.subr.mxu0 0.0
  %428 = vmatpush1.msra.mxu0 0.0
  %429 = vmatprep.subr.mxu0 0.0
  %430 = vmatpush1.msra.mxu0 0.0
  %431 = vmatprep.subr.mxu0 0.0
  %432 = vmatpush1.msra.mxu0 0.0
  %433 = vmatprep.subr.mxu0 0.0
  %434 = vmatpush1.msra.mxu0 0.0
  %435 = vmatprep.subr.mxu0 0.0
  %436 = vmatpush1.msra.mxu0 %v342
  %437 = vmatprep.subr.mxu0 0.0
  %438 = vmatpush1.msra.mxu0 %v341
  %439 = vmatprep.subr.mxu0 0.0
  %440 = vmatpush1.msra.mxu0 %v340
  %441 = vmatprep.subr.mxu0 0.0
  %442 = vmatpush1.msra.mxu0 %v339
  %443 = vmatprep.subr.mxu0 0.0
  %444 = vmatpush1.msra.mxu0 %v338
  %445 = vmatprep.subr.mxu0 0.0
  %446 = vmatpush1.msra.mxu0 %v337
  %447 = vmatprep.subr.mxu0 0.0
  %448 = vmatpush2.msra.mxu0 0.0
  %449 = vmatprep.subr.mxu0 0.0
  %450 = vmatpush2.msra.mxu0 0.0
  %451 = vmatprep.subr.mxu0 0.0
  %452 = vmatpush2.msra.mxu0 0.0
  %453 = vmatprep.subr.mxu0 0.0
  %454 = vmatpush2.msra.mxu0 0.0
  %455 = vmatprep.subr.mxu0 0.0
  %456 = vmatpush2.msra.mxu0 0.0
  %457 = vmatprep.subr.mxu0 0.0
  %458 = vmatpush2.msra.mxu0 0.0
  %459 = vmatprep.subr.mxu0 0.0
  %460 = vmatpush2.msra.mxu0 0.0
  %461 = vmatprep.subr.mxu0 0.0
  %462 = vmatpush2.msra.mxu0 0.0
  %463 = vmatprep.subr.mxu0 0.0
  %464 = vmatpush2.msra.mxu0 0.0
  %465 = vmatprep.subr.mxu0 0.0
  %466 = vmatpush2.msra.mxu0 0.0
  %467 = vmatprep.subr.mxu0 0.0
  %468 = vmatpush2.msra.mxu0 0.0
  %469 = vmatprep.subr.mxu0 0.0
  %470 = vmatpush2.msra.mxu0 0.0
  %471 = vmatprep.subr.mxu0 0.0
  %472 = vmatpush2.msra.mxu0 0.0
  %473 = vmatprep.subr.mxu0 0.0
  %474 = vmatpush2.msra.mxu0 0.0
  %475 = vmatprep.subr.mxu0 0.0
  %476 = vmatpush2.msra.mxu0 0.0
  %477 = vmatprep.subr.mxu0 0.0
  %478 = vmatpush2.msra.mxu0 0.0
  %479 = vmatprep.mubr.f32.mxu0 0.0
  %480 = vmatmul.mubr.f32.gmra.mxu0 %v398
  %v481 = vpop.f32.mrf.mxu0
  %v482 = vadd.f32 0.0, %v481
  %v483 = vpop.f32.mrf.mxu0
  %484 = vmatprep.mubr.f32.mxu0 0.0
  %485 = vmatmul.mubr.f32.gmra.mxu0 %v401
  %v486 = vpop.f32.mrf.mxu0
  %v487 = vadd.f32 0.0, %v486
  %v488 = vpop.f32.mrf.mxu0
  %489 = vmatprep.mubr.f32.mxu0 0.0
  %490 = vmatmul.mubr.f32.gmra.mxu0 %v404
  %v491 = vpop.f32.mrf.mxu0
  %v492 = vadd.f32 0.0, %v491
  %v493 = vpop.f32.mrf.mxu0
  %494 = vmatprep.mubr.f32.mxu0 0.0
  %495 = vmatmul.mubr.f32.gmra.mxu0 %v407
  %v496 = vpop.f32.mrf.mxu0
  %v497 = vadd.f32 0.0, %v496
  %v498 = vpop.f32.mrf.mxu0
  %499 = vmatprep.mubr.f32.mxu0 0.0
  %500 = vmatmul.mubr.f32.gmra.mxu0 %v410
  %v501 = vpop.f32.mrf.mxu0
  %v502 = vadd.f32 0.0, %v501
  %v503 = vpop.f32.mrf.mxu0
  %504 = vmatprep.mubr.f32.mxu0 0.0
  %505 = vmatmul.mubr.f32.gmra.mxu0 %v413
  %v506 = vpop.f32.mrf.mxu0
  %v507 = vadd.f32 0.0, %v506
  %v508 = vpop.f32.mrf.mxu0
  %509 = vdwg.mxu0
  %v511 = vlaneseq
  %v512 = vshrl.u32 %v511, 7
  %v513 = vsub.s32 0, %v512
  %v514 = vrot.slane %v357, %v513
  %vm516 = vcmask 523264
  %v518 = vsel %vm516, %v482, 0
  %v521 = vsel %vm516, %v487, 0
  %v524 = vsel %vm516, %v492, 0
  %v527 = vsel %vm516, %v497, 0
  %v530 = vsel %vm516, %v502, 0
  %v533 = vsel %vm516, %v507, 0
  %535 = vmatprep.subr.mxu0 0.0
  %536 = vmatpush1.msra.mxu0 0.0
  %537 = vmatprep.subr.mxu0 0.0
  %538 = vmatpush1.msra.mxu0 0.0
  %539 = vmatprep.subr.mxu0 0.0
  %540 = vmatpush1.msra.mxu0 0.0
  %541 = vmatprep.subr.mxu0 0.0
  %542 = vmatpush1.msra.mxu0 0.0
  %543 = vmatprep.subr.mxu0 0.0
  %544 = vmatpush1.msra.mxu0 0.0
  %545 = vmatprep.subr.mxu0 0.0
  %546 = vmatpush1.msra.mxu0 0.0
  %547 = vmatprep.subr.mxu0 0.0
  %548 = vmatpush1.msra.mxu0 0.0
  %549 = vmatprep.subr.mxu0 0.0
  %550 = vmatpush1.msra.mxu0 0.0
  %551 = vmatprep.subr.mxu0 0.0
  %552 = vmatpush1.msra.mxu0 %v350
  %553 = vmatprep.subr.mxu0 0.0
  %554 = vmatpush1.msra.mxu0 %v349
  %555 = vmatprep.subr.mxu0 0.0
  %556 = vmatpush1.msra.mxu0 %v348
  %557 = vmatprep.subr.mxu0 0.0
  %558 = vmatpush1.msra.mxu0 %v347
  %559 = vmatprep.subr.mxu0 0.0
  %560 = vmatpush1.msra.mxu0 %v346
  %561 = vmatprep.subr.mxu0 0.0
  %562 = vmatpush1.msra.mxu0 %v345
  %563 = vmatprep.subr.mxu0 0.0
  %564 = vmatpush1.msra.mxu0 %v344
  %565 = vmatprep.subr.mxu0 0.0
  %566 = vmatpush1.msra.mxu0 %v343
  %567 = vmatprep.subr.mxu0 0.0
  %568 = vmatpush2.msra.mxu0 0.0
  %569 = vmatprep.subr.mxu0 0.0
  %570 = vmatpush2.msra.mxu0 0.0
  %571 = vmatprep.subr.mxu0 0.0
  %572 = vmatpush2.msra.mxu0 0.0
  %573 = vmatprep.subr.mxu0 0.0
  %574 = vmatpush2.msra.mxu0 0.0
  %575 = vmatprep.subr.mxu0 0.0
  %576 = vmatpush2.msra.mxu0 0.0
  %577 = vmatprep.subr.mxu0 0.0
  %578 = vmatpush2.msra.mxu0 0.0
  %579 = vmatprep.subr.mxu0 0.0
  %580 = vmatpush2.msra.mxu0 0.0
  %581 = vmatprep.subr.mxu0 0.0
  %582 = vmatpush2.msra.mxu0 0.0
  %583 = vmatprep.subr.mxu0 0.0
  %584 = vmatpush2.msra.mxu0 0.0
  %585 = vmatprep.subr.mxu0 0.0
  %586 = vmatpush2.msra.mxu0 0.0
  %587 = vmatprep.subr.mxu0 0.0
  %588 = vmatpush2.msra.mxu0 0.0
  %589 = vmatprep.subr.mxu0 0.0
  %590 = vmatpush2.msra.mxu0 0.0
  %591 = vmatprep.subr.mxu0 0.0
  %592 = vmatpush2.msra.mxu0 0.0
  %593 = vmatprep.subr.mxu0 0.0
  %594 = vmatpush2.msra.mxu0 0.0
  %595 = vmatprep.subr.mxu0 0.0
  %596 = vmatpush2.msra.mxu0 0.0
  %597 = vmatprep.subr.mxu0 0.0
  %598 = vmatpush2.msra.mxu0 0.0
  %599 = vmatprep.mubr.f32.mxu0 0.0
  %600 = vmatmul.mubr.f32.gmra.mxu0 %v518
  %v601 = vpop.f32.mrf.mxu0
  %v602 = vadd.f32 %v514, %v601
  %v603 = vpop.f32.mrf.mxu0
  %604 = vmatprep.mubr.f32.mxu0 0.0
  %605 = vmatmul.mubr.f32.gmra.mxu0 %v521
  %v606 = vpop.f32.mrf.mxu0
  %v607 = vadd.f32 %v514, %v606
  %v608 = vpop.f32.mrf.mxu0
  %609 = vmatprep.mubr.f32.mxu0 0.0
  %610 = vmatmul.mubr.f32.gmra.mxu0 %v524
  %v611 = vpop.f32.mrf.mxu0
  %v612 = vadd.f32 %v514, %v611
  %v613 = vpop.f32.mrf.mxu0
  %614 = vmatprep.mubr.f32.mxu0 0.0
  %615 = vmatmul.mubr.f32.gmra.mxu0 %v527
  %v616 = vpop.f32.mrf.mxu0
  %v617 = vadd.f32 %v514, %v616
  %v618 = vpop.f32.mrf.mxu0
  %619 = vmatprep.mubr.f32.mxu0 0.0
  %620 = vmatmul.mubr.f32.gmra.mxu0 %v530
  %v621 = vpop.f32.mrf.mxu0
  %v622 = vadd.f32 %v514, %v621
  %v623 = vpop.f32.mrf.mxu0
  %624 = vmatprep.mubr.f32.mxu0 0.0
  %625 = vmatmul.mubr.f32.gmra.mxu0 %v533
  %v626 = vpop.f32.mrf.mxu0
  %v627 = vadd.f32 %v514, %v626
  %v628 = vpop.f32.mrf.mxu0
  %629 = vdwg.mxu0
  %v630 = vmul.f32 %v602, %v358
  %v631 = vmul.f32 %v607, %v359
  %v632 = vmul.f32 %v612, %v360
  %v633 = vmul.f32 %v617, %v361
  %v634 = vmul.f32 %v622, %v362
  %v635 = vmul.f32 %v627, %v363
  %v636 = vadd.f32 %v630, %v364
  %v637 = vadd.f32 %v631, %v365
  %v638 = vadd.f32 %v632, %v366
  %v639 = vadd.f32 %v633, %v367
  %v640 = vadd.f32 %v634, %v368
  %v641 = vadd.f32 %v635, %v369
  %v642 = vtanh.pop %v636
  %v643 = vtanh.pop %v637
  %v644 = vtanh.pop %v638
  %v645 = vtanh.pop %v639
  %v646 = vtanh.pop %v640
  %v647 = vtanh.pop %v641
  %v649 = vsel %vm91, %v378, 0
  %v652 = vsel %vm91, %v379, 0
  %v655 = vsel %vm91, %v380, 0
  %v658 = vsel %vm91, %v381, 0
  %v661 = vsel %vm91, %v382, 0
  %v664 = vsel %vm91, %v383, 0
  %666 = vmatprep.subr.mxu0 0.0
  %667 = vmatpush1.msra.mxu0 0.0
  %668 = vmatprep.subr.mxu0 0.0
  %669 = vmatpush1.msra.mxu0 0.0
  %670 = vmatprep.subr.mxu0 0.0
  %671 = vmatpush1.msra.mxu0 0.0
  %672 = vmatprep.subr.mxu0 0.0
  %673 = vmatpush1.msra.mxu0 0.0
  %674 = vmatprep.subr.mxu0 0.0
  %675 = vmatpush1.msra.mxu0 0.0
  %676 = vmatprep.subr.mxu0 0.0
  %677 = vmatpush1.msra.mxu0 0.0
  %678 = vmatprep.subr.mxu0 0.0
  %679 = vmatpush1.msra.mxu0 0.0
  %680 = vmatprep.subr.mxu0 0.0
  %681 = vmatpush1.msra.mxu0 0.0
  %682 = vmatprep.subr.mxu0 0.0
  %683 = vmatpush1.msra.mxu0 0.0
  %684 = vmatprep.subr.mxu0 0.0
  %685 = vmatpush1.msra.mxu0 0.0
  %686 = vmatprep.subr.mxu0 0.0
  %687 = vmatpush1.msra.mxu0 %v647
  %688 = vmatprep.subr.mxu0 0.0
  %689 = vmatpush1.msra.mxu0 %v646
  %690 = vmatprep.subr.mxu0 0.0
  %691 = vmatpush1.msra.mxu0 %v645
  %692 = vmatprep.subr.mxu0 0.0
  %693 = vmatpush1.msra.mxu0 %v644
  %694 = vmatprep.subr.mxu0 0.0
  %695 = vmatpush1.msra.mxu0 %v643
  %696 = vmatprep.subr.mxu0 0.0
  %697 = vmatpush1.msra.mxu0 %v642
  %698 = vmatprep.subr.mxu0 0.0
  %699 = vmatpush2.msra.mxu0 0.0
  %700 = vmatprep.subr.mxu0 0.0
  %701 = vmatpush2.msra.mxu0 0.0
  %702 = vmatprep.subr.mxu0 0.0
  %703 = vmatpush2.msra.mxu0 0.0
  %704 = vmatprep.subr.mxu0 0.0
  %705 = vmatpush2.msra.mxu0 0.0
  %706 = vmatprep.subr.mxu0 0.0
  %707 = vmatpush2.msra.mxu0 0.0
  %708 = vmatprep.subr.mxu0 0.0
  %709 = vmatpush2.msra.mxu0 0.0
  %710 = vmatprep.subr.mxu0 0.0
  %711 = vmatpush2.msra.mxu0 0.0
  %712 = vmatprep.subr.mxu0 0.0
  %713 = vmatpush2.msra.mxu0 0.0
  %714 = vmatprep.subr.mxu0 0.0
  %715 = vmatpush2.msra.mxu0 0.0
  %716 = vmatprep.subr.mxu0 0.0
  %717 = vmatpush2.msra.mxu0 0.0
  %718 = vmatprep.subr.mxu0 0.0
  %719 = vmatpush2.msra.mxu0 0.0
  %720 = vmatprep.subr.mxu0 0.0
  %721 = vmatpush2.msra.mxu0 0.0
  %722 = vmatprep.subr.mxu0 0.0
  %723 = vmatpush2.msra.mxu0 0.0
  %724 = vmatprep.subr.mxu0 0.0
  %725 = vmatpush2.msra.mxu0 0.0
  %726 = vmatprep.subr.mxu0 0.0
  %727 = vmatpush2.msra.mxu0 0.0
  %728 = vmatprep.subr.mxu0 0.0
  %729 = vmatpush2.msra.mxu0 0.0
  %730 = vmatprep.mubr.f32.mxu0 0.0
  %731 = vmatmul.mubr.f32.gmra.mxu0 %v649
  %v732 = vpop.f32.mrf.mxu0
  %v733 = vadd.f32 0.0, %v732
  %v734 = vpop.f32.mrf.mxu0
  %735 = vmatprep.mubr.f32.mxu0 0.0
  %736 = vmatmul.mubr.f32.gmra.mxu0 %v652
  %v737 = vpop.f32.mrf.mxu0
  %v738 = vadd.f32 0.0, %v737
  %v739 = vpop.f32.mrf.mxu0
  %740 = vmatprep.mubr.f32.mxu0 0.0
  %741 = vmatmul.mubr.f32.gmra.mxu0 %v655
  %v742 = vpop.f32.mrf.mxu0
  %v743 = vadd.f32 0.0, %v742
  %v744 = vpop.f32.mrf.mxu0
  %745 = vmatprep.mubr.f32.mxu0 0.0
  %746 = vmatmul.mubr.f32.gmra.mxu0 %v658
  %v747 = vpop.f32.mrf.mxu0
  %v748 = vadd.f32 0.0, %v747
  %v749 = vpop.f32.mrf.mxu0
  %750 = vmatprep.mubr.f32.mxu0 0.0
  %751 = vmatmul.mubr.f32.gmra.mxu0 %v661
  %v752 = vpop.f32.mrf.mxu0
  %v753 = vadd.f32 0.0, %v752
  %v754 = vpop.f32.mrf.mxu0
  %755 = vmatprep.mubr.f32.mxu0 0.0
  %756 = vmatmul.mubr.f32.gmra.mxu0 %v664
  %v757 = vpop.f32.mrf.mxu0
  %v758 = vadd.f32 0.0, %v757
  %v759 = vpop.f32.mrf.mxu0
  %760 = vdwg.mxu0
  %v762 = vlaneseq
  %v763 = vshrl.u32 %v762, 7
  %v764 = vsub.s32 0, %v763
  %v765 = vrot.slane %v384, %v764
  %v768 = vsel %vm516, %v733, 0
  %v771 = vsel %vm516, %v738, 0
  %v774 = vsel %vm516, %v743, 0
  %v777 = vsel %vm516, %v748, 0
  %v780 = vsel %vm516, %v753, 0
  %v783 = vsel %vm516, %v758, 0
  %785 = vmatprep.subr.mxu0 0.0
  %786 = vmatpush1.msra.mxu0 0.0
  %787 = vmatprep.subr.mxu0 0.0
  %788 = vmatpush1.msra.mxu0 0.0
  %789 = vmatprep.subr.mxu0 0.0
  %790 = vmatpush1.msra.mxu0 0.0
  %791 = vmatprep.subr.mxu0 0.0
  %792 = vmatpush1.msra.mxu0 0.0
  %793 = vmatprep.subr.mxu0 0.0
  %794 = vmatpush1.msra.mxu0 0.0
  %795 = vmatprep.subr.mxu0 0.0
  %796 = vmatpush1.msra.mxu0 0.0
  %797 = vmatprep.subr.mxu0 0.0
  %798 = vmatpush1.msra.mxu0 0.0
  %799 = vmatprep.subr.mxu0 0.0
  %800 = vmatpush1.msra.mxu0 0.0
  %801 = vmatprep.subr.mxu0 0.0
  %802 = vmatpush1.msra.mxu0 %v377
  %803 = vmatprep.subr.mxu0 0.0
  %804 = vmatpush1.msra.mxu0 %v376
  %805 = vmatprep.subr.mxu0 0.0
  %806 = vmatpush1.msra.mxu0 %v375
  %807 = vmatprep.subr.mxu0 0.0
  %808 = vmatpush1.msra.mxu0 %v374
  %809 = vmatprep.subr.mxu0 0.0
  %810 = vmatpush1.msra.mxu0 %v373
  %811 = vmatprep.subr.mxu0 0.0
  %812 = vmatpush1.msra.mxu0 %v372
  %813 = vmatprep.subr.mxu0 0.0
  %814 = vmatpush1.msra.mxu0 %v371
  %815 = vmatprep.subr.mxu0 0.0
  %816 = vmatpush1.msra.mxu0 %v370
  %817 = vmatprep.subr.mxu0 0.0
  %818 = vmatpush2.msra.mxu0 0.0
  %819 = vmatprep.subr.mxu0 0.0
  %820 = vmatpush2.msra.mxu0 0.0
  %821 = vmatprep.subr.mxu0 0.0
  %822 = vmatpush2.msra.mxu0 0.0
  %823 = vmatprep.subr.mxu0 0.0
  %824 = vmatpush2.msra.mxu0 0.0
  %825 = vmatprep.subr.mxu0 0.0
  %826 = vmatpush2.msra.mxu0 0.0
  %827 = vmatprep.subr.mxu0 0.0
  %828 = vmatpush2.msra.mxu0 0.0
  %829 = vmatprep.subr.mxu0 0.0
  %830 = vmatpush2.msra.mxu0 0.0
  %831 = vmatprep.subr.mxu0 0.0
  %832 = vmatpush2.msra.mxu0 0.0
  %833 = vmatprep.subr.mxu0 0.0
  %834 = vmatpush2.msra.mxu0 0.0
  %835 = vmatprep.subr.mxu0 0.0
  %836 = vmatpush2.msra.mxu0 0.0
  %837 = vmatprep.subr.mxu0 0.0
  %838 = vmatpush2.msra.mxu0 0.0
  %839 = vmatprep.subr.mxu0 0.0
  %840 = vmatpush2.msra.mxu0 0.0
  %841 = vmatprep.subr.mxu0 0.0
  %842 = vmatpush2.msra.mxu0 0.0
  %843 = vmatprep.subr.mxu0 0.0
  %844 = vmatpush2.msra.mxu0 0.0
  %845 = vmatprep.subr.mxu0 0.0
  %846 = vmatpush2.msra.mxu0 0.0
  %847 = vmatprep.subr.mxu0 0.0
  %848 = vmatpush2.msra.mxu0 0.0
  %849 = vmatprep.mubr.f32.mxu0 0.0
  %850 = vmatmul.mubr.f32.gmra.mxu0 %v768
  %v851 = vpop.f32.mrf.mxu0
  %v852 = vadd.f32 %v765, %v851
  %v853 = vpop.f32.mrf.mxu0
  %854 = vmatprep.mubr.f32.mxu0 0.0
  %855 = vmatmul.mubr.f32.gmra.mxu0 %v771
  %v856 = vpop.f32.mrf.mxu0
  %v857 = vadd.f32 %v765, %v856
  %v858 = vpop.f32.mrf.mxu0
  %859 = vmatprep.mubr.f32.mxu0 0.0
  %860 = vmatmul.mubr.f32.gmra.mxu0 %v774
  %v861 = vpop.f32.mrf.mxu0
  %v862 = vadd.f32 %v765, %v861
  %v863 = vpop.f32.mrf.mxu0
  %864 = vmatprep.mubr.f32.mxu0 0.0
  %865 = vmatmul.mubr.f32.gmra.mxu0 %v777
  %v866 = vpop.f32.mrf.mxu0
  %v867 = vadd.f32 %v765, %v866
  %v868 = vpop.f32.mrf.mxu0
  %869 = vmatprep.mubr.f32.mxu0 0.0
  %870 = vmatmul.mubr.f32.gmra.mxu0 %v780
  %v871 = vpop.f32.mrf.mxu0
  %v872 = vadd.f32 %v765, %v871
  %v873 = vpop.f32.mrf.mxu0
  %874 = vmatprep.mubr.f32.mxu0 0.0
  %875 = vmatmul.mubr.f32.gmra.mxu0 %v783
  %v876 = vpop.f32.mrf.mxu0
  %v877 = vadd.f32 %v765, %v876
  %v878 = vpop.f32.mrf.mxu0
  %879 = vdwg.mxu0
  %v880 = vmul.f32 %v852, %v385
  %v881 = vmul.f32 %v857, %v386
  %v882 = vmul.f32 %v862, %v387
  %v883 = vmul.f32 %v867, %v388
  %v884 = vmul.f32 %v872, %v389
  %v885 = vmul.f32 %v877, %v390
  %v886 = vadd.f32 %v880, %v391
  %v887 = vadd.f32 %v881, %v392
  %v888 = vadd.f32 %v882, %v393
  %v889 = vadd.f32 %v883, %v394
  %v890 = vadd.f32 %v884, %v395
  %v891 = vadd.f32 %v885, %v396
  %v892 = vtanh.pop %v886
  %v893 = vtanh.pop %v887
  %v894 = vtanh.pop %v888
  %v895 = vtanh.pop %v889
  %v896 = vtanh.pop %v890
  %v897 = vtanh.pop %v891
  %v898 = vadd.f32 %v892, %v337
  %v899 = vadd.f32 %v893, %v338
  %v900 = vadd.f32 %v894, %v339
  %v901 = vadd.f32 %v895, %v340
  %v902 = vadd.f32 %v896, %v341
  %v903 = vadd.f32 %v897, %v342
  %v904 = vld [vmem:[%s16] sm:$0xff]
  %v905 = vld [vmem:[%s16 + $0x8] sm:$0xff]
  %v906 = vld [vmem:[%s16 + $0x10] sm:$0xff]
  %v907 = vld [vmem:[%s16 + $0x18] sm:$0xff]
  %v908 = vld [vmem:[%s16 + $0x20] sm:$0xff]
  %v909 = vld [vmem:[%s16 + $0x28] sm:$0xff]
  %v910 = vld [vmem:[%s16 + $0x30] sm:$0xff]
  %v911 = vld [vmem:[%s16 + $0x38] sm:$0xff]
  %v912 = vld [vmem:[%s17] sm:$0xff]
  %v913 = vld [vmem:[%s17 + $0x8] sm:$0xff]
  %v914 = vld [vmem:[%s17 + $0x10] sm:$0xff]
  %v915 = vld [vmem:[%s17 + $0x18] sm:$0xff]
  %v916 = vld [vmem:[%s17 + $0x20] sm:$0xff]
  %v917 = vld [vmem:[%s17 + $0x28] sm:$0xff]
  %v918 = vld [vmem:[%s18] sm:$0x1]
  %v920 = vsel %vm516, %v898, 0
  %v923 = vsel %vm516, %v899, 0
  %v926 = vsel %vm516, %v900, 0
  %v929 = vsel %vm516, %v901, 0
  %v932 = vsel %vm516, %v902, 0
  %v935 = vsel %vm516, %v903, 0
  %937 = vmatprep.subr.mxu0 0.0
  %938 = vmatpush1.msra.mxu0 0.0
  %939 = vmatprep.subr.mxu0 0.0
  %940 = vmatpush1.msra.mxu0 0.0
  %941 = vmatprep.subr.mxu0 0.0
  %942 = vmatpush1.msra.mxu0 0.0
  %943 = vmatprep.subr.mxu0 0.0
  %944 = vmatpush1.msra.mxu0 0.0
  %945 = vmatprep.subr.mxu0 0.0
  %946 = vmatpush1.msra.mxu0 0.0
  %947 = vmatprep.subr.mxu0 0.0
  %948 = vmatpush1.msra.mxu0 0.0
  %949 = vmatprep.subr.mxu0 0.0
  %950 = vmatpush1.msra.mxu0 0.0
  %951 = vmatprep.subr.mxu0 0.0
  %952 = vmatpush1.msra.mxu0 0.0
  %953 = vmatprep.subr.mxu0 0.0
  %954 = vmatpush1.msra.mxu0 %v911
  %955 = vmatprep.subr.mxu0 0.0
  %956 = vmatpush1.msra.mxu0 %v910
  %957 = vmatprep.subr.mxu0 0.0
  %958 = vmatpush1.msra.mxu0 %v909
  %959 = vmatprep.subr.mxu0 0.0
  %960 = vmatpush1.msra.mxu0 %v908
  %961 = vmatprep.subr.mxu0 0.0
  %962 = vmatpush1.msra.mxu0 %v907
  %963 = vmatprep.subr.mxu0 0.0
  %964 = vmatpush1.msra.mxu0 %v906
  %965 = vmatprep.subr.mxu0 0.0
  %966 = vmatpush1.msra.mxu0 %v905
  %967 = vmatprep.subr.mxu0 0.0
  %968 = vmatpush1.msra.mxu0 %v904
  %969 = vmatprep.subr.mxu0 0.0
  %970 = vmatpush2.msra.mxu0 0.0
  %971 = vmatprep.subr.mxu0 0.0
  %972 = vmatpush2.msra.mxu0 0.0
  %973 = vmatprep.subr.mxu0 0.0
  %974 = vmatpush2.msra.mxu0 0.0
  %975 = vmatprep.subr.mxu0 0.0
  %976 = vmatpush2.msra.mxu0 0.0
  %977 = vmatprep.subr.mxu0 0.0
  %978 = vmatpush2.msra.mxu0 0.0
  %979 = vmatprep.subr.mxu0 0.0
  %980 = vmatpush2.msra.mxu0 0.0
  %981 = vmatprep.subr.mxu0 0.0
  %982 = vmatpush2.msra.mxu0 0.0
  %983 = vmatprep.subr.mxu0 0.0
  %984 = vmatpush2.msra.mxu0 0.0
  %985 = vmatprep.subr.mxu0 0.0
  %986 = vmatpush2.msra.mxu0 0.0
  %987 = vmatprep.subr.mxu0 0.0
  %988 = vmatpush2.msra.mxu0 0.0
  %989 = vmatprep.subr.mxu0 0.0
  %990 = vmatpush2.msra.mxu0 0.0
  %991 = vmatprep.subr.mxu0 0.0
  %992 = vmatpush2.msra.mxu0 0.0
  %993 = vmatprep.subr.mxu0 0.0
  %994 = vmatpush2.msra.mxu0 0.0
  %995 = vmatprep.subr.mxu0 0.0
  %996 = vmatpush2.msra.mxu0 0.0
  %997 = vmatprep.subr.mxu0 0.0
  %998 = vmatpush2.msra.mxu0 0.0
  %999 = vmatprep.subr.mxu0 0.0
  %1000 = vmatpush2.msra.mxu0 0.0
  %1001 = vmatprep.mubr.f32.mxu0 0.0
  %1002 = vmatmul.mubr.f32.gmra.mxu0 %v920
  %v1003 = vpop.f32.mrf.mxu0
  %v1004 = vadd.f32 0.0, %v1003
  %v1005 = vpop.f32.mrf.mxu0
  %1006 = vmatprep.mubr.f32.mxu0 0.0
  %1007 = vmatmul.mubr.f32.gmra.mxu0 %v923
  %v1008 = vpop.f32.mrf.mxu0
  %v1009 = vadd.f32 0.0, %v1008
  %v1010 = vpop.f32.mrf.mxu0
  %1011 = vmatprep.mubr.f32.mxu0 0.0
  %1012 = vmatmul.mubr.f32.gmra.mxu0 %v926
  %v1013 = vpop.f32.mrf.mxu0
  %v1014 = vadd.f32 0.0, %v1013
  %v1015 = vpop.f32.mrf.mxu0
  %1016 = vmatprep.mubr.f32.mxu0 0.0
  %1017 = vmatmul.mubr.f32.gmra.mxu0 %v929
  %v1018 = vpop.f32.mrf.mxu0
  %v1019 = vadd.f32 0.0, %v1018
  %v1020 = vpop.f32.mrf.mxu0
  %1021 = vmatprep.mubr.f32.mxu0 0.0
  %1022 = vmatmul.mubr.f32.gmra.mxu0 %v932
  %v1023 = vpop.f32.mrf.mxu0
  %v1024 = vadd.f32 0.0, %v1023
  %v1025 = vpop.f32.mrf.mxu0
  %1026 = vmatprep.mubr.f32.mxu0 0.0
  %1027 = vmatmul.mubr.f32.gmra.mxu0 %v935
  %v1028 = vpop.f32.mrf.mxu0
  %v1029 = vadd.f32 0.0, %v1028
  %v1030 = vpop.f32.mrf.mxu0
  %1031 = vdwg.mxu0
  %v1033 = vlaneseq
  %v1034 = vshrl.u32 %v1033, 7
  %v1035 = vsub.s32 0, %v1034
  %v1036 = vrot.slane %v918, %v1035
  %v1039 = vsel %vm91, %v912, 0
  %v1042 = vsel %vm91, %v913, 0
  %v1045 = vsel %vm91, %v914, 0
  %v1048 = vsel %vm91, %v915, 0
  %v1051 = vsel %vm91, %v916, 0
  %v1054 = vsel %vm91, %v917, 0
  %1056 = vmatprep.subr.mxu0 0.0
  %1057 = vmatpush1.msra.mxu0 0.0
  %1058 = vmatprep.subr.mxu0 0.0
  %1059 = vmatpush1.msra.mxu0 0.0
  %1060 = vmatprep.subr.mxu0 0.0
  %1061 = vmatpush1.msra.mxu0 0.0
  %1062 = vmatprep.subr.mxu0 0.0
  %1063 = vmatpush1.msra.mxu0 0.0
  %1064 = vmatprep.subr.mxu0 0.0
  %1065 = vmatpush1.msra.mxu0 0.0
  %1066 = vmatprep.subr.mxu0 0.0
  %1067 = vmatpush1.msra.mxu0 0.0
  %1068 = vmatprep.subr.mxu0 0.0
  %1069 = vmatpush1.msra.mxu0 0.0
  %1070 = vmatprep.subr.mxu0 0.0
  %1071 = vmatpush1.msra.mxu0 0.0
  %1072 = vmatprep.subr.mxu0 0.0
  %1073 = vmatpush1.msra.mxu0 0.0
  %1074 = vmatprep.subr.mxu0 0.0
  %1075 = vmatpush1.msra.mxu0 0.0
  %1076 = vmatprep.subr.mxu0 0.0
  %1077 = vmatpush1.msra.mxu0 %v1029
  %1078 = vmatprep.subr.mxu0 0.0
  %1079 = vmatpush1.msra.mxu0 %v1024
  %1080 = vmatprep.subr.mxu0 0.0
  %1081 = vmatpush1.msra.mxu0 %v1019
  %1082 = vmatprep.subr.mxu0 0.0
  %1083 = vmatpush1.msra.mxu0 %v1014
  %1084 = vmatprep.subr.mxu0 0.0
  %1085 = vmatpush1.msra.mxu0 %v1009
  %1086 = vmatprep.subr.mxu0 0.0
  %1087 = vmatpush1.msra.mxu0 %v1004
  %1088 = vmatprep.subr.mxu0 0.0
  %1089 = vmatpush2.msra.mxu0 0.0
  %1090 = vmatprep.subr.mxu0 0.0
  %1091 = vmatpush2.msra.mxu0 0.0
  %1092 = vmatprep.subr.mxu0 0.0
  %1093 = vmatpush2.msra.mxu0 0.0
  %1094 = vmatprep.subr.mxu0 0.0
  %1095 = vmatpush2.msra.mxu0 0.0
  %1096 = vmatprep.subr.mxu0 0.0
  %1097 = vmatpush2.msra.mxu0 0.0
  %1098 = vmatprep.subr.mxu0 0.0
  %1099 = vmatpush2.msra.mxu0 0.0
  %1100 = vmatprep.subr.mxu0 0.0
  %1101 = vmatpush2.msra.mxu0 0.0
  %1102 = vmatprep.subr.mxu0 0.0
  %1103 = vmatpush2.msra.mxu0 0.0
  %1104 = vmatprep.subr.mxu0 0.0
  %1105 = vmatpush2.msra.mxu0 0.0
  %1106 = vmatprep.subr.mxu0 0.0
  %1107 = vmatpush2.msra.mxu0 0.0
  %1108 = vmatprep.subr.mxu0 0.0
  %1109 = vmatpush2.msra.mxu0 0.0
  %1110 = vmatprep.subr.mxu0 0.0
  %1111 = vmatpush2.msra.mxu0 0.0
  %1112 = vmatprep.subr.mxu0 0.0
  %1113 = vmatpush2.msra.mxu0 0.0
  %1114 = vmatprep.subr.mxu0 0.0
  %1115 = vmatpush2.msra.mxu0 0.0
  %1116 = vmatprep.subr.mxu0 0.0
  %1117 = vmatpush2.msra.mxu0 0.0
  %1118 = vmatprep.subr.mxu0 0.0
  %1119 = vmatpush2.msra.mxu0 0.0
  %1120 = vmatprep.mubr.f32.mxu0 0.0
  %1121 = vmatmul.mubr.f32.gmra.mxu0 %v1039
  %v1122 = vpop.f32.mrf.mxu0
  %v1123 = vadd.f32 %v1036, %v1122
  %v1124 = vpop.f32.mrf.mxu0
  %1125 = vmatprep.mubr.f32.mxu0 0.0
  %1126 = vmatmul.mubr.f32.gmra.mxu0 %v1042
  %v1127 = vpop.f32.mrf.mxu0
  %v1128 = vadd.f32 %v1036, %v1127
  %v1129 = vpop.f32.mrf.mxu0
  %1130 = vmatprep.mubr.f32.mxu0 0.0
  %1131 = vmatmul.mubr.f32.gmra.mxu0 %v1045
  %v1132 = vpop.f32.mrf.mxu0
  %v1133 = vadd.f32 %v1036, %v1132
  %v1134 = vpop.f32.mrf.mxu0
  %1135 = vmatprep.mubr.f32.mxu0 0.0
  %1136 = vmatmul.mubr.f32.gmra.mxu0 %v1048
  %v1137 = vpop.f32.mrf.mxu0
  %v1138 = vadd.f32 %v1036, %v1137
  %v1139 = vpop.f32.mrf.mxu0
  %1140 = vmatprep.mubr.f32.mxu0 0.0
  %1141 = vmatmul.mubr.f32.gmra.mxu0 %v1051
  %v1142 = vpop.f32.mrf.mxu0
  %v1143 = vadd.f32 %v1036, %v1142
  %v1144 = vpop.f32.mrf.mxu0
  %1145 = vmatprep.mubr.f32.mxu0 0.0
  %1146 = vmatmul.mubr.f32.gmra.mxu0 %v1054
  %v1147 = vpop.f32.mrf.mxu0
  %v1148 = vadd.f32 %v1036, %v1147
  %v1149 = vpop.f32.mrf.mxu0
  %1150 = vdwg.mxu0
  %v1151 = vadd.f32 %v1123, %v62
  %v1152 = vadd.f32 %v1128, %v63
  %v1153 = vadd.f32 %v1133, %v64
  %v1154 = vadd.f32 %v1138, %v65
  %v1155 = vadd.f32 %v1143, %v66
  %v1156 = vadd.f32 %v1148, %v67
  %1157 = vst.msk [vmem:[%s19] sm:$0xff] %vm211, %v1151
  %1158 = vst.msk [vmem:[%s19 + $0x8] sm:$0xff] %vm211, %v1152
  %1159 = vst.msk [vmem:[%s19 + $0x10] sm:$0xff] %vm211, %v1153
  %1160 = vst.msk [vmem:[%s19 + $0x18] sm:$0xff] %vm211, %v1154
  %1161 = vst.msk [vmem:[%s19 + $0x20] sm:$0xff] %vm211, %v1155
  %1162 = vst.msk [vmem:[%s19 + $0x28] sm:$0xff] %vm211, %v1156
  // Predicated region
  $region78: #{gcn_forward.1} parent=0 // pred_check
    _
  $region79: #{gcn_forward.1} parent=0 // pred_check_branch
    %1164 = sbr.rel (0) target = $region81
  $region80: #{gcn_forward.1} parent=0 // pred_region
    _
  $region81: #{gcn_forward.1} parent=0 // pred_fallthru
    _
  // Predicated region
  $region82: #{gcn_forward.1} parent=0 // pred_check
    _
  $region83: #{gcn_forward.1} parent=0 // pred_check_branch
    %1166 = sbr.rel (0) target = $region85
  $region84: #{gcn_forward.1} parent=0 // pred_region
    _
  $region85: #{gcn_forward.1} parent=0 // pred_fallthru
    _

</llo_original>
